<compile_context>
chip_gen: v5e
topology: v5e:2x2
jax: 0.10.0
libtpu: 0.0.40
codegen_flags: <defaults>
</compile_context>

<pallas_src>
import jax
import jax.numpy as jnp
from jax.experimental import pallas as pl
from jax.experimental.pallas import tpu as pltpu

_VMEM = pl.BlockSpec(memory_space=pltpu.MemorySpace.VMEM)


# --------------------------------- kernel ------------------------------------

def _make_kernel(meta, Bn, T, nwarmup):
    """Fused HiroLRAN forward (deterministic reset_probability=0 path)."""
    state_dim = meta['state_dim']
    act_len = meta['act_len']
    latent = meta['latent']
    enc_meta = meta['enc']
    dec_meta = meta['dec']
    b_off, b_in, b_out = meta['bmat']
    gamma_row, beta_row, diag_row = meta['gamma_row'], meta['beta_row'], meta['diag_row']
    rows = Bn * T
    n_scan = (T - 1).bit_length()                  # ceil(log2(T)); 0 when T == 1
    max_sh = 1 << (n_scan - 1) if n_scan else 0
    pad_rows = ((max_sh + 7) // 8) * 8             # sublane-aligned zero pad for shifts

    # TODO(synk): stochastic per-step resets (reset_probability > 0) would need
    # pltpu.prng_* inside the rollout; only the module's deterministic default
    # path (reset_probability = 0) is implemented.

    def kernel(pin_ref, w_ref, v_ref, out_ref):
        # ---- in-kernel layout: slice x_t / u_{t+1} out of padded_input and
        # flatten batch-major to (B*T, f); no wrapper-side transposes. ----
        xs, us = [], []
        for b_i in range(Bn):
            blk = pin_ref[b_i]                               # (T, input_dim)
            xs.append(blk[:, :state_dim])
            us.append(blk[:, state_dim + act_len:])
        x = jnp.concatenate(xs, axis=0)                      # (rows, state_dim)
        u1 = jnp.concatenate(us, axis=0)                     # (rows, act_len)

        # ---- encoder MLP (Linear + ReLU on every layer): single lane-dense 2D
        # matmuls over statically-sliced blocks of the packed weight slab. ----
        h = x
        for (off, in_d, out_d, b_row) in enc_meta:
            w = w_ref[off:off + in_d, :out_d]
            b = v_ref[b_row:b_row + 1, :out_d]
            h = jnp.maximum(
                jnp.dot(h, w, preferred_element_type=jnp.float32) + b, 0.0)

        # ---- BatchNorm1d, training mode: per-channel stats over (batch, time),
        # biased variance (matches PyTorch's normalization). ----
        gamma = v_ref[gamma_row:gamma_row + 1, :latent]
        beta = v_ref[beta_row:beta_row + 1, :latent]
        mean = jnp.mean(h, axis=0, keepdims=True)
        cen = h - mean
        var = jnp.mean(cen * cen, axis=0, keepdims=True)
        z = cen * jax.lax.rsqrt(var + 1e-5) * gamma + beta   # (rows, latent)

        # ---- latent dynamics: A = clamped diagonal, B u_{t+1} hoisted out of
        # the recurrence as one (rows, act) x (act, latent) matmul. ----
        diag = jnp.clip(v_ref[diag_row:diag_row + 1, :latent], -0.7, 0.7)
        wb = w_ref[b_off:b_off + b_in, :b_out]               # (act_len, latent)
        c = jnp.dot(u1, wb, preferred_element_type=jnp.float32)

        # per-row time index (batch-major rows: r = b*T + t)
        t_idx = jnp.concatenate(
            [jax.lax.broadcasted_iota(jnp.int32, (T, 1), 0)] * Bn, axis=0)

        # First-order recurrence h_t = a_t * h_{t-1} + b_t with
        #   a_t = 0,    b_t = diag*z_t + c_t   for t <= nwarmup  (reset / seed)
        #   a_t = diag, b_t = c_t              otherwise,
        # solved by a log2(T)-depth doubling scan on the whole slab.
        warm = t_idx <= nwarmup
        a = jnp.where(warm, 0.0, diag)
        b0 = jnp.where(warm, diag * z + c, c)
        if n_scan:
            zpad = jnp.zeros((pad_rows, latent), jnp.float32)
            for k in range(n_scan):
                sh = 1 << k
                # shift by `sh` time steps = `sh` rows via a zero-padded static
                # slice (pltpu.roll(x, sh, axis=0) is the single-XLU-op form).
                lo = pad_rows - sh
                b_sh = jnp.concatenate([zpad, b0], axis=0)[lo:lo + rows, :]
                a_sh = jnp.concatenate([zpad, a], axis=0)[lo:lo + rows, :]
                valid = t_idx >= sh        # never combine across batch boundary
                b0 = jnp.where(valid, a * b_sh + b0, b0)
                a = jnp.where(valid, a * a_sh, a)
        h = b0                                               # z_{t+1}, (rows, latent)

        # ---- decoder MLP: Linear + ReLU, last layer Linear only. ----
        n_dec = len(dec_meta)
        for i, (off, in_d, out_d, b_row) in enumerate(dec_meta):
            w = w_ref[off:off + in_d, :out_d]
            b = v_ref[b_row:b_row + 1, :out_d]
            h = jnp.dot(h, w, preferred_element_type=jnp.float32) + b
            if i < n_dec - 1:
                h = jnp.maximum(h, 0.0)

        # ---- write output directly in (B, T, state_dim) order ----
        for b_i in range(Bn):
            out_ref[b_i] = h[b_i * T:(b_i + 1) * T, :]

    return kernel


# ------------------------------ pallas wrapper --------------------------------

def hirolran_forward(weights, vecs, padded_input, meta, nwarmup=0):
    """HiroLRAN.forward with reset_probability=0 (module default)."""
    B, T, _ = padded_input.shape
    kernel = _make_kernel(meta, B, T, nwarmup)
    return pl.pallas_call(
        kernel,
        out_shape=jax.ShapeDtypeStruct((B, T, meta['state_dim']), jnp.float32),
        in_specs=[_VMEM, _VMEM, _VMEM],
        out_specs=_VMEM,
    )(padded_input, weights, vecs)
    # NOTE(scale): with larger T*B add a row-block grid with
    # dimension_semantics=("parallel",) (2-pass BN) for v7x's 2 TensorCores, set
    # vmem_limit_bytes for the 64 MiB v7x VMEM, and cast matmul operands to bf16.


# ------------------------- one-time parameter packing --------------------------

def pack_params(params):
    """Repack into kernel layout ONCE: all Linear weights + B as (in, out) blocks
    row-stacked into one zero-padded slab (8-sublane-aligned offsets), and all 1-D
    vectors (biases, gamma, beta, diag) as rows of a second slab.  Removes per-call
    transpose/reshape HLOs and collapses ~16 tiny HBM->VMEM DMAs into 3."""
    enc, dec = params['encoder'], params['decoder']
    latent = int(params['bn_gamma'].shape[0])
    act_len = int(params['B'].shape[1])
    state_dim = int(dec[-1][0].shape[0])

    mats = [w.T for (w, _) in enc] + [params['B'].T] + [w.T for (w, _) in dec]
    width = max(int(m.shape[1]) for m in mats)
    blocks, offs, row = [], [], 0
    for m in mats:
        r = ((int(m.shape[0]) + 7) // 8) * 8
        blocks.append(jnp.pad(m.astype(jnp.float32),
                              ((0, r - m.shape[0]), (0, width - m.shape[1]))))
        offs.append(row)
        row += r
    weights = jnp.concatenate(blocks, axis=0)                # (sum_rows, width)

    vlist = ([b for (_, b) in enc]
             + [params['bn_gamma'], params['bn_beta'], params['diag']]
             + [b for (_, b) in dec])
    vecs = jnp.stack([jnp.pad(v.astype(jnp.float32), (0, width - v.shape[0]))
                      for v in vlist])                       # (n_vecs, width)

    n_enc = len(enc)
    meta = dict(
        enc=[(offs[i], int(enc[i][0].shape[1]), int(enc[i][0].shape[0]), i)
             for i in range(n_enc)],
        bmat=(offs[n_enc], act_len, latent),
        dec=[(offs[n_enc + 1 + i], int(dec[i][0].shape[1]),
              int(dec[i][0].shape[0]), n_enc + 3 + i)
             for i in range(len(dec))],
        gamma_row=n_enc, beta_row=n_enc + 1, diag_row=n_enc + 2,
        latent=latent, act_len=act_len, state_dim=state_dim,
    )
    return weights, vecs, meta


# ------------------------------ parameter init --------------------------------

def make_params(key, input_dim, output_dim, latent_dim, encoder_dim,
                encoder_extra_layers=1):
    state_dim = output_dim
    act_len = (input_dim - state_dim) // 2
    keys = iter(jax.random.split(key, 64))

    def lin(o, i):
        bnd = 1.0 / (float(i) ** 0.5)
        return (jax.random.uniform(next(keys), (o, i), jnp.float32, -bnd, bnd),
                jax.random.uniform(next(keys), (o,), jnp.float32, -bnd, bnd))

    encoder = [lin(encoder_dim, state_dim)]
    encoder += [lin(encoder_dim, encoder_dim) for _ in range(encoder_extra_layers)]
    encoder += [lin(latent_dim, encoder_dim)]

    decoder = [lin(encoder_dim, latent_dim)]
    decoder += [lin(encoder_dim, encoder_dim) for _ in range(encoder_extra_layers)]
    decoder += [lin(state_dim, encoder_dim)]

    b_bnd = 1.0 / (float(act_len) ** 0.5)
    return dict(
        encoder=encoder,
        decoder=decoder,
        bn_gamma=jnp.ones((latent_dim,), jnp.float32),
        bn_beta=jnp.zeros((latent_dim,), jnp.float32),
        # wider-than-clamp init so the clamp path in DiagonalLinear is exercised
        diag=jax.random.uniform(next(keys), (latent_dim,), jnp.float32, -1.0, 1.0),
        B=jax.random.uniform(next(keys), (latent_dim, act_len), jnp.float32,
                             -b_bnd, b_bnd),
    )


# ------------------------------ pure-JAX reference -----------------------------

def ref_forward(params, padded_input, nwarmup=0):
    B, T, input_dim = padded_input.shape
    state_dim = params['decoder'][-1][0].shape[0]
    act_len = (input_dim - state_dim) // 2

    x_t = padded_input[:, :, :state_dim]
    u_t1 = padded_input[:, :, state_dim + act_len:]

    h = x_t
    for w, b in params['encoder']:
        h = jnp.maximum(h @ w.T + b, 0.0)

    mean = jnp.mean(h, axis=(0, 1), keepdims=True)
    var = jnp.mean((h - mean) ** 2, axis=(0, 1), keepdims=True)
    z = (h - mean) / jnp.sqrt(var + 1e-5) * params['bn_gamma'] + params['bn_beta']

    d = jnp.clip(params['diag'], -0.7, 0.7)
    bu = u_t1 @ params['B'].T                                 # (B, T, latent)
    outs, prev = [], None
    for t in range(T):
        inp = z[:, t] if t <= nwarmup else prev
        prev = inp * d + bu[:, t]
        outs.append(prev)
    z1 = jnp.stack(outs, axis=1)                              # (B, T, latent)

    h = z1
    n_dec = len(params['decoder'])
    for i, (w, b) in enumerate(params['decoder']):
        h = h @ w.T + b
        if i < n_dec - 1:
            h = jnp.maximum(h, 0.0)
    return h


# ----------------------------------- main --------------------------------------

if __name__ == "__main__":
    key = jax.random.PRNGKey(0)
    kp, kx = jax.random.split(key)

    output_dim, latent_dim, encoder_dim, act_len = 8, 32, 64, 4
    input_dim = output_dim + 2 * act_len          # 16
    B, T = 2, 8

    params = make_params(kp, input_dim, output_dim, latent_dim, encoder_dim,
                         encoder_extra_layers=1)
    padded_input = jax.random.normal(kx, (B, T, input_dim), jnp.float32)

    # one-time packing into kernel layout (not part of the per-call graph)
    weights, vecs, meta = pack_params(params)

    fwd = jax.jit(lambda w, v, x: hirolran_forward(w, v, x, meta, nwarmup=0))
    out = jax.block_until_ready(fwd(weights, vecs, padded_input))

    ref = ref_forward(params, padded_input)
    assert out.shape == (B, T, output_dim), out.shape
    assert bool(jnp.all(jnp.isfinite(out)))
    assert bool(jnp.allclose(out, ref, rtol=2e-2, atol=2e-3)), \
        float(jnp.max(jnp.abs(out - ref)))
    print("KERNEL_OK")
</pallas_src>

<mosaic_0001>
module attributes {stable_mosaic.version = 11 : i64} {
  func.func @kernel(%arg0: memref<2x8x16xf32, #tpu.memory_space<vmem>>, %arg1: memref<304x64xf32, #tpu.memory_space<vmem>>, %arg2: memref<9x64xf32, #tpu.memory_space<vmem>>, %arg3: memref<2x8x8xf32, #tpu.memory_space<vmem>>) attributes {dimension_semantics = [], scalar_prefetch = 0 : i64, scratch_operands = 0 : i64, tpu.core_type = #tpu.core_type<tc>} {
    %c0 = arith.constant 0 : index
    %c0_0 = arith.constant 0 : index
    %c0_1 = arith.constant 0 : index
    %0 = vector.load %arg0[%c0, %c0_0, %c0_1] : memref<2x8x16xf32, #tpu.memory_space<vmem>>, vector<1x8x16xf32>
    %1 = vector.shape_cast %0 : vector<1x8x16xf32> to vector<8x16xf32>
    %2 = vector.extract_strided_slice %1 {offsets = [0, 0], sizes = [8, 8], strides = [1, 1]} : vector<8x16xf32> to vector<8x8xf32>
    %3 = vector.extract_strided_slice %1 {offsets = [0, 12], sizes = [8, 4], strides = [1, 1]} : vector<8x16xf32> to vector<8x4xf32>
    %c1 = arith.constant 1 : index
    %c0_2 = arith.constant 0 : index
    %c0_3 = arith.constant 0 : index
    %4 = vector.load %arg0[%c1, %c0_2, %c0_3] : memref<2x8x16xf32, #tpu.memory_space<vmem>>, vector<1x8x16xf32>
    %5 = vector.shape_cast %4 : vector<1x8x16xf32> to vector<8x16xf32>
    %6 = vector.extract_strided_slice %5 {offsets = [0, 0], sizes = [8, 8], strides = [1, 1]} : vector<8x16xf32> to vector<8x8xf32>
    %7 = vector.extract_strided_slice %5 {offsets = [0, 12], sizes = [8, 4], strides = [1, 1]} : vector<8x16xf32> to vector<8x4xf32>
    %8 = tpu.concatenate %2, %6 in 0 : vector<8x8xf32>, vector<8x8xf32> -> vector<16x8xf32>
    %9 = tpu.concatenate %3, %7 in 0 : vector<8x4xf32>, vector<8x4xf32> -> vector<16x4xf32>
    %c0_4 = arith.constant 0 : index
    %c0_5 = arith.constant 0 : index
    %10 = vector.load %arg1[%c0_4, %c0_5] : memref<304x64xf32, #tpu.memory_space<vmem>>, vector<8x64xf32>
    %c0_6 = arith.constant 0 : index
    %c0_7 = arith.constant 0 : index
    %11 = vector.load %arg2[%c0_6, %c0_7] : memref<9x64xf32, #tpu.memory_space<vmem>>, vector<1x64xf32>
    %cst = arith.constant dense<0.000000e+00> : vector<16x64xf32>
    %12 = tpu.matmul %8, %10, %cst {dimension_numbers = #tpu.dot_dimension_numbers<[1], [0], [0], [1], [0, 0, 1, 1], [], []>} : vector<16x8xf32>, vector<8x64xf32>, vector<16x64xf32> -> vector<16x64xf32>
    %13 = vector.broadcast %11 : vector<1x64xf32> to vector<16x64xf32>
    %14 = arith.addf %12, %13 : vector<16x64xf32>
    %cst_8 = arith.constant 0.000000e+00 : f32
    %15 = vector.broadcast %cst_8 : f32 to vector<16x64xf32>
    %16 = arith.maximumf %14, %15 : vector<16x64xf32>
    %c8 = arith.constant 8 : index
    %c0_9 = arith.constant 0 : index
    %17 = vector.load %arg1[%c8, %c0_9] : memref<304x64xf32, #tpu.memory_space<vmem>>, vector<64x64xf32>
    %c1_10 = arith.constant 1 : index
    %c0_11 = arith.constant 0 : index
    %18 = vector.load %arg2[%c1_10, %c0_11] : memref<9x64xf32, #tpu.memory_space<vmem>>, vector<1x64xf32>
    %cst_12 = arith.constant dense<0.000000e+00> : vector<16x64xf32>
    %19 = tpu.matmul %16, %17, %cst_12 {dimension_numbers = #tpu.dot_dimension_numbers<[1], [0], [0], [1], [0, 0, 1, 1], [], []>} : vector<16x64xf32>, vector<64x64xf32>, vector<16x64xf32> -> vector<16x64xf32>
    %20 = vector.broadcast %18 : vector<1x64xf32> to vector<16x64xf32>
    %21 = arith.addf %19, %20 : vector<16x64xf32>
    %cst_13 = arith.constant 0.000000e+00 : f32
    %22 = vector.broadcast %cst_13 : f32 to vector<16x64xf32>
    %23 = arith.maximumf %21, %22 : vector<16x64xf32>
    %c72 = arith.constant 72 : index
    %c0_14 = arith.constant 0 : index
    %24 = vector.load %arg1[%c72, %c0_14] : memref<304x64xf32, #tpu.memory_space<vmem>>, vector<64x32xf32>
    %c2 = arith.constant 2 : index
    %c0_15 = arith.constant 0 : index
    %25 = vector.load %arg2[%c2, %c0_15] : memref<9x64xf32, #tpu.memory_space<vmem>>, vector<1x32xf32>
    %cst_16 = arith.constant dense<0.000000e+00> : vector<16x32xf32>
    %26 = tpu.matmul %23, %24, %cst_16 {dimension_numbers = #tpu.dot_dimension_numbers<[1], [0], [0], [1], [0, 0, 1, 1], [], []>} : vector<16x64xf32>, vector<64x32xf32>, vector<16x32xf32> -> vector<16x32xf32>
    %27 = vector.broadcast %25 : vector<1x32xf32> to vector<16x32xf32>
    %28 = arith.addf %26, %27 : vector<16x32xf32>
    %cst_17 = arith.constant 0.000000e+00 : f32
    %29 = vector.broadcast %cst_17 : f32 to vector<16x32xf32>
    %30 = arith.maximumf %28, %29 : vector<16x32xf32>
    %c3 = arith.constant 3 : index
    %c0_18 = arith.constant 0 : index
    %31 = vector.load %arg2[%c3, %c0_18] : memref<9x64xf32, #tpu.memory_space<vmem>>, vector<1x32xf32>
    %c4 = arith.constant 4 : index
    %c0_19 = arith.constant 0 : index
    %32 = vector.load %arg2[%c4, %c0_19] : memref<9x64xf32, #tpu.memory_space<vmem>>, vector<1x32xf32>
    %cst_20 = arith.constant dense<0.000000e+00> : vector<32xf32>
    %33 = vector.multi_reduction <add>, %30, %cst_20 [0] : vector<16x32xf32> to vector<32xf32>
    %34 = vector.shape_cast %33 : vector<32xf32> to vector<1x32xf32>
    %cst_21 = arith.constant 1.600000e+01 : f32
    %35 = vector.broadcast %cst_21 : f32 to vector<1x32xf32>
    %36 = arith.divf %34, %35 : vector<1x32xf32>
    %37 = vector.broadcast %36 : vector<1x32xf32> to vector<16x32xf32>
    %38 = arith.subf %30, %37 : vector<16x32xf32>
    %39 = arith.mulf %38, %38 : vector<16x32xf32>
    %cst_22 = arith.constant dense<0.000000e+00> : vector<32xf32>
    %40 = vector.multi_reduction <add>, %39, %cst_22 [0] : vector<16x32xf32> to vector<32xf32>
    %41 = vector.shape_cast %40 : vector<32xf32> to vector<1x32xf32>
    %cst_23 = arith.constant 1.600000e+01 : f32
    %42 = vector.broadcast %cst_23 : f32 to vector<1x32xf32>
    %43 = arith.divf %41, %42 : vector<1x32xf32>
    %cst_24 = arith.constant 9.99999974E-6 : f32
    %44 = vector.broadcast %cst_24 : f32 to vector<1x32xf32>
    %45 = arith.addf %43, %44 : vector<1x32xf32>
    %46 = math.rsqrt %45 : vector<1x32xf32>
    %47 = vector.broadcast %46 : vector<1x32xf32> to vector<16x32xf32>
    %48 = arith.mulf %38, %47 : vector<16x32xf32>
    %49 = vector.broadcast %31 : vector<1x32xf32> to vector<16x32xf32>
    %50 = arith.mulf %48, %49 : vector<16x32xf32>
    %51 = vector.broadcast %32 : vector<1x32xf32> to vector<16x32xf32>
    %52 = arith.addf %50, %51 : vector<16x32xf32>
    %c5 = arith.constant 5 : index
    %c0_25 = arith.constant 0 : index
    %53 = vector.load %arg2[%c5, %c0_25] : memref<9x64xf32, #tpu.memory_space<vmem>>, vector<1x32xf32>
    %cst_26 = arith.constant -0.699999988 : f32
    %cst_27 = arith.constant 0.699999988 : f32
    %54 = vector.broadcast %cst_26 : f32 to vector<1x32xf32>
    %55 = arith.maximumf %54, %53 : vector<1x32xf32>
    %56 = vector.broadcast %cst_27 : f32 to vector<1x32xf32>
    %57 = arith.minimumf %56, %55 : vector<1x32xf32>
    %c136 = arith.constant 136 : index
    %c0_28 = arith.constant 0 : index
    %58 = vector.load %arg1[%c136, %c0_28] : memref<304x64xf32, #tpu.memory_space<vmem>>, vector<4x32xf32>
    %cst_29 = arith.constant dense<0.000000e+00> : vector<16x32xf32>
    %59 = tpu.matmul %9, %58, %cst_29 {dimension_numbers = #tpu.dot_dimension_numbers<[1], [0], [0], [1], [0, 0, 1, 1], [], []>} : vector<16x4xf32>, vector<4x32xf32>, vector<16x32xf32> -> vector<16x32xf32>
    %60 = tpu.iota {dimensions = array<i32: 0>} : vector<8x1xi32>
    %61 = tpu.concatenate %60, %60 in 0 : vector<8x1xi32>, vector<8x1xi32> -> vector<16x1xi32>
    %c0_i32 = arith.constant 0 : i32
    %62 = vector.broadcast %c0_i32 : i32 to vector<16x1xi32>
    %63 = arith.cmpi sle, %61, %62 : vector<16x1xi32>
    %cst_30 = arith.constant 0.000000e+00 : f32
    %64 = vector.shape_cast %63 : vector<16x1xi1> to vector<16x1xi1>
    %65 = vector.broadcast %64 : vector<16x1xi1> to vector<16x32xi1>
    %66 = vector.broadcast %cst_30 : f32 to vector<16x32xf32>
    %67 = vector.shape_cast %57 : vector<1x32xf32> to vector<1x32xf32>
    %68 = vector.broadcast %67 : vector<1x32xf32> to vector<16x32xf32>
    %69 = arith.select %65, %66, %68 : vector<16x32xi1>, vector<16x32xf32>
    %70 = vector.broadcast %57 : vector<1x32xf32> to vector<16x32xf32>
    %71 = arith.mulf %70, %52 : vector<16x32xf32>
    %72 = arith.addf %71, %59 : vector<16x32xf32>
    %73 = vector.shape_cast %63 : vector<16x1xi1> to vector<16x1xi1>
    %74 = vector.broadcast %73 : vector<16x1xi1> to vector<16x32xi1>
    %75 = arith.select %74, %72, %59 : vector<16x32xi1>, vector<16x32xf32>
    %cst_31 = arith.constant 0.000000e+00 : f32
    %76 = vector.broadcast %cst_31 : f32 to vector<8x32xf32>
    %77 = tpu.concatenate %76, %75 in 0 : vector<8x32xf32>, vector<16x32xf32> -> vector<24x32xf32>
    %78 = vector.extract_strided_slice %77 {offsets = [7, 0], sizes = [16, 32], strides = [1, 1]} : vector<24x32xf32> to vector<16x32xf32>
    %79 = tpu.concatenate %76, %69 in 0 : vector<8x32xf32>, vector<16x32xf32> -> vector<24x32xf32>
    %80 = vector.extract_strided_slice %79 {offsets = [7, 0], sizes = [16, 32], strides = [1, 1]} : vector<24x32xf32> to vector<16x32xf32>
    %c1_i32 = arith.constant 1 : i32
    %81 = vector.broadcast %c1_i32 : i32 to vector<16x1xi32>
    %82 = arith.cmpi sge, %61, %81 : vector<16x1xi32>
    %83 = arith.mulf %69, %78 : vector<16x32xf32>
    %84 = arith.addf %83, %75 : vector<16x32xf32>
    %85 = vector.shape_cast %82 : vector<16x1xi1> to vector<16x1xi1>
    %86 = vector.broadcast %85 : vector<16x1xi1> to vector<16x32xi1>
    %87 = arith.select %86, %84, %75 : vector<16x32xi1>, vector<16x32xf32>
    %88 = arith.mulf %69, %80 : vector<16x32xf32>
    %89 = vector.shape_cast %82 : vector<16x1xi1> to vector<16x1xi1>
    %90 = vector.broadcast %89 : vector<16x1xi1> to vector<16x32xi1>
    %91 = arith.select %90, %88, %69 : vector<16x32xi1>, vector<16x32xf32>
    %92 = tpu.concatenate %76, %87 in 0 : vector<8x32xf32>, vector<16x32xf32> -> vector<24x32xf32>
    %93 = vector.extract_strided_slice %92 {offsets = [6, 0], sizes = [16, 32], strides = [1, 1]} : vector<24x32xf32> to vector<16x32xf32>
    %94 = tpu.concatenate %76, %91 in 0 : vector<8x32xf32>, vector<16x32xf32> -> vector<24x32xf32>
    %95 = vector.extract_strided_slice %94 {offsets = [6, 0], sizes = [16, 32], strides = [1, 1]} : vector<24x32xf32> to vector<16x32xf32>
    %c2_i32 = arith.constant 2 : i32
    %96 = vector.broadcast %c2_i32 : i32 to vector<16x1xi32>
    %97 = arith.cmpi sge, %61, %96 : vector<16x1xi32>
    %98 = arith.mulf %91, %93 : vector<16x32xf32>
    %99 = arith.addf %98, %87 : vector<16x32xf32>
    %100 = vector.shape_cast %97 : vector<16x1xi1> to vector<16x1xi1>
    %101 = vector.broadcast %100 : vector<16x1xi1> to vector<16x32xi1>
    %102 = arith.select %101, %99, %87 : vector<16x32xi1>, vector<16x32xf32>
    %103 = arith.mulf %91, %95 : vector<16x32xf32>
    %104 = vector.shape_cast %97 : vector<16x1xi1> to vector<16x1xi1>
    %105 = vector.broadcast %104 : vector<16x1xi1> to vector<16x32xi1>
    %106 = arith.select %105, %103, %91 : vector<16x32xi1>, vector<16x32xf32>
    %107 = tpu.concatenate %76, %102 in 0 : vector<8x32xf32>, vector<16x32xf32> -> vector<24x32xf32>
    %108 = vector.extract_strided_slice %107 {offsets = [4, 0], sizes = [16, 32], strides = [1, 1]} : vector<24x32xf32> to vector<16x32xf32>
    %c4_i32 = arith.constant 4 : i32
    %109 = vector.broadcast %c4_i32 : i32 to vector<16x1xi32>
    %110 = arith.cmpi sge, %61, %109 : vector<16x1xi32>
    %111 = arith.mulf %106, %108 : vector<16x32xf32>
    %112 = arith.addf %111, %102 : vector<16x32xf32>
    %113 = vector.shape_cast %110 : vector<16x1xi1> to vector<16x1xi1>
    %114 = vector.broadcast %113 : vector<16x1xi1> to vector<16x32xi1>
    %115 = arith.select %114, %112, %102 : vector<16x32xi1>, vector<16x32xf32>
    %c144 = arith.constant 144 : index
    %c0_32 = arith.constant 0 : index
    %116 = vector.load %arg1[%c144, %c0_32] : memref<304x64xf32, #tpu.memory_space<vmem>>, vector<32x64xf32>
    %c6 = arith.constant 6 : index
    %c0_33 = arith.constant 0 : index
    %117 = vector.load %arg2[%c6, %c0_33] : memref<9x64xf32, #tpu.memory_space<vmem>>, vector<1x64xf32>
    %cst_34 = arith.constant dense<0.000000e+00> : vector<16x64xf32>
    %118 = tpu.matmul %115, %116, %cst_34 {dimension_numbers = #tpu.dot_dimension_numbers<[1], [0], [0], [1], [0, 0, 1, 1], [], []>} : vector<16x32xf32>, vector<32x64xf32>, vector<16x64xf32> -> vector<16x64xf32>
    %119 = vector.broadcast %117 : vector<1x64xf32> to vector<16x64xf32>
    %120 = arith.addf %118, %119 : vector<16x64xf32>
    %cst_35 = arith.constant 0.000000e+00 : f32
    %121 = vector.broadcast %cst_35 : f32 to vector<16x64xf32>
    %122 = arith.maximumf %120, %121 : vector<16x64xf32>
    %c176 = arith.constant 176 : index
    %c0_36 = arith.constant 0 : index
    %123 = vector.load %arg1[%c176, %c0_36] : memref<304x64xf32, #tpu.memory_space<vmem>>, vector<64x64xf32>
    %c7 = arith.constant 7 : index
    %c0_37 = arith.constant 0 : index
    %124 = vector.load %arg2[%c7, %c0_37] : memref<9x64xf32, #tpu.memory_space<vmem>>, vector<1x64xf32>
    %cst_38 = arith.constant dense<0.000000e+00> : vector<16x64xf32>
    %125 = tpu.matmul %122, %123, %cst_38 {dimension_numbers = #tpu.dot_dimension_numbers<[1], [0], [0], [1], [0, 0, 1, 1], [], []>} : vector<16x64xf32>, vector<64x64xf32>, vector<16x64xf32> -> vector<16x64xf32>
    %126 = vector.broadcast %124 : vector<1x64xf32> to vector<16x64xf32>
    %127 = arith.addf %125, %126 : vector<16x64xf32>
    %cst_39 = arith.constant 0.000000e+00 : f32
    %128 = vector.broadcast %cst_39 : f32 to vector<16x64xf32>
    %129 = arith.maximumf %127, %128 : vector<16x64xf32>
    %c240 = arith.constant 240 : index
    %c0_40 = arith.constant 0 : index
    %130 = vector.load %arg1[%c240, %c0_40] : memref<304x64xf32, #tpu.memory_space<vmem>>, vector<64x8xf32>
    %c8_41 = arith.constant 8 : index
    %c0_42 = arith.constant 0 : index
    %131 = vector.load %arg2[%c8_41, %c0_42] : memref<9x64xf32, #tpu.memory_space<vmem>>, vector<1x8xf32>
    %cst_43 = arith.constant dense<0.000000e+00> : vector<16x8xf32>
    %132 = tpu.matmul %129, %130, %cst_43 {dimension_numbers = #tpu.dot_dimension_numbers<[1], [0], [0], [1], [0, 0, 1, 1], [], []>} : vector<16x64xf32>, vector<64x8xf32>, vector<16x8xf32> -> vector<16x8xf32>
    %133 = vector.broadcast %131 : vector<1x8xf32> to vector<16x8xf32>
    %134 = arith.addf %132, %133 : vector<16x8xf32>
    %135 = vector.extract_strided_slice %134 {offsets = [0, 0], sizes = [8, 8], strides = [1, 1]} : vector<16x8xf32> to vector<8x8xf32>
    %c0_44 = arith.constant 0 : index
    %c0_45 = arith.constant 0 : index
    %c0_46 = arith.constant 0 : index
    %136 = vector.load %arg3[%c0_44, %c0_45, %c0_46] : memref<2x8x8xf32, #tpu.memory_space<vmem>>, vector<1x8x8xf32>
    %137 = vector.shape_cast %136 : vector<1x8x8xf32> to vector<8x8xf32>
    %138 = vector.shape_cast %135 : vector<8x8xf32> to vector<1x8x8xf32>
    tpu.vector_store %arg3[%c0_44, %c0_45, %c0_46], %138 {strides = array<i32>} : memref<2x8x8xf32, #tpu.memory_space<vmem>>, vector<1x8x8xf32>,
    %139 = vector.extract_strided_slice %134 {offsets = [8, 0], sizes = [8, 8], strides = [1, 1]} : vector<16x8xf32> to vector<8x8xf32>
    %c1_47 = arith.constant 1 : index
    %c0_48 = arith.constant 0 : index
    %c0_49 = arith.constant 0 : index
    %140 = vector.load %arg3[%c1_47, %c0_48, %c0_49] : memref<2x8x8xf32, #tpu.memory_space<vmem>>, vector<1x8x8xf32>
    %141 = vector.shape_cast %140 : vector<1x8x8xf32> to vector<8x8xf32>
    %142 = vector.shape_cast %139 : vector<8x8xf32> to vector<1x8x8xf32>
    tpu.vector_store %arg3[%c1_47, %c0_48, %c0_49], %142 {strides = array<i32>} : memref<2x8x8xf32, #tpu.memory_space<vmem>>, vector<1x8x8xf32>,
    return
  }
}

</mosaic_0001>

<llo_original>
// kernel: _lambda_.1
$region0: #{_lambda_.1}
  #allocation0 [shape = 'u32[]', space=smem, size = 0x4, offset = 0x4, fixed_abs, tag = 'smem constant byte address 0x4 - core index']
  #allocation1 [shape = 'u32[72,128]{1,0:T(1,128)}', space=vmem, size = 0x9000, scoped, tag = 'internal scratch']
  %s0 = inlined_call_operand.vmem [shape: f32[2,8,16], index: 0, kind: input, shape index: {}]
  %s1 = inlined_call_operand.vmem [shape: f32[304,64], index: 1, kind: input, shape index: {}]
  %s2 = inlined_call_operand.vmem [shape: f32[9,64], index: 2, kind: input, shape index: {}]
  %s3 = inlined_call_operand.hbm [shape: f32[2,8,8], index: 3, kind: output, shape index: {}]
  %s4 = sld [smem:[#allocation0]]
  $region22: #{_lambda_.1} parent=0
    _
  %s6 = ssub.s32 1, %s4
  %s7 = scalar_select 0, %s6, %s4
  $region1: #{_lambda_.1} parent=0
    #allocation2 [shape = 'u8[8192]{0}', space=vmem, size = 0x2000, scoped, tag = 'output window, operand 0, single buffered']
    #allocation3 [shape = 's32[1]{0}', space=sflag, size = 0x4, scoped, tag = 'scoped memory for _lambda_.1']
    %8 = vsyncpa [#allocation3], 0
    // Predicated region
    $region2: #{_lambda_.1} parent=1 // pred_check
      _
    $region3: #{_lambda_.1} parent=1 // pred_check_branch
      %10 = sbr.rel (0) target = $region5
    $region4: #{_lambda_.1} parent=1 // pred_region
      _
    $region5: #{_lambda_.1} parent=1 // pred_fallthru
      _
    // Predicated region
    $region6: #{_lambda_.1} parent=1 // pred_check
      _
    $region7: #{_lambda_.1} parent=1 // pred_check_branch
      %12 = sbr.rel (0) target = $region9
    $region8: #{_lambda_.1} parent=1 // pred_region
      _
    $region9: #{_lambda_.1} parent=1 // pred_fallthru
      _
    // Predicated region
    $region10: #{_lambda_.1} parent=1 // pred_check
      _
    $region11: #{_lambda_.1} parent=1 // pred_check_branch
      %14 = sbr.rel (0) target = $region13
    $region12: #{_lambda_.1} parent=1 // pred_region
      _
    $region13: #{_lambda_.1} parent=1 // pred_fallthru
      _
    %v15 = vld [vmem:[%s0] sm:$0xff]
    %s16 = scalar_lea.vmem %s0, 8
    %v17 = vld [vmem:[%s16] sm:$0xff]
    %v18 = vld [vmem:[%s1] sm:$0xff]
    %v19 = vld [vmem:[%s2] sm:$0x1]
    %v20 = vperm.slane %v19, 0
    %vm21 = vcmask 64512
    %v23 = vsel %vm21, %v15, 0
    %v26 = vsel %vm21, %v17, 0
    %28 = vmatpush.msra.mxu0 0.0
    %29 = vmatpush.msra.mxu0 0.0
    %30 = vmatpush.msra.mxu0 0.0
    %31 = vmatpush.msra.mxu0 0.0
    %32 = vmatpush.msra.mxu0 0.0
    %33 = vmatpush.msra.mxu0 0.0
    %34 = vmatpush.msra.mxu0 0.0
    %35 = vmatpush.msra.mxu0 0.0
    %36 = vmatpush.msra.mxu0 0.0
    %37 = vmatpush.msra.mxu0 0.0
    %38 = vmatpush.msra.mxu0 0.0
    %39 = vmatpush.msra.mxu0 0.0
    %40 = vmatpush.msra.mxu0 0.0
    %41 = vmatpush.msra.mxu0 0.0
    %42 = vmatpush.msra.mxu0 0.0
    %43 = vmatpush.msra.mxu0 %v18
    %44 = vmatmul.f32.gmra.mxu0 %v23
    %v45 = vpop.f32.mrf.mxu0
    %v46 = vadd.f32 %v20, %v45
    %47 = vmatmul.f32.gmra.mxu0 %v26
    %v48 = vpop.f32.mrf.mxu0
    %v49 = vadd.f32 %v20, %v48
    %50 = vdwg.mxu0
    %v51 = vmax.f32 %v46, 0.0
    %v52 = vmax.f32 %v49, 0.0
    %v53 = vld [vmem:[%s1 + $0x8] sm:$0xff]
    %v54 = vld [vmem:[%s1 + $0x10] sm:$0xff]
    %v55 = vld [vmem:[%s1 + $0x18] sm:$0xff]
    %v56 = vld [vmem:[%s1 + $0x20] sm:$0xff]
    %v57 = vld [vmem:[%s1 + $0x28] sm:$0xff]
    %v58 = vld [vmem:[%s1 + $0x30] sm:$0xff]
    %v59 = vld [vmem:[%s1 + $0x38] sm:$0xff]
    %v60 = vld [vmem:[%s1 + $0x40] sm:$0xff]
    %v61 = vld [vmem:[%s2 + $0x1] sm:$0x1]
    %v62 = vperm.slane %v61, 0
    %vm63 = vcmask 523264
    %v65 = vsel %vm63, %v51, 0
    %v68 = vsel %vm63, %v52, 0
    %70 = vmatpush.msra.mxu0 0.0
    %71 = vmatpush.msra.mxu0 0.0
    %72 = vmatpush.msra.mxu0 0.0
    %73 = vmatpush.msra.mxu0 0.0
    %74 = vmatpush.msra.mxu0 0.0
    %75 = vmatpush.msra.mxu0 0.0
    %76 = vmatpush.msra.mxu0 0.0
    %77 = vmatpush.msra.mxu0 0.0
    %78 = vmatpush.msra.mxu0 %v60
    %79 = vmatpush.msra.mxu0 %v59
    %80 = vmatpush.msra.mxu0 %v58
    %81 = vmatpush.msra.mxu0 %v57
    %82 = vmatpush.msra.mxu0 %v56
    %83 = vmatpush.msra.mxu0 %v55
    %84 = vmatpush.msra.mxu0 %v54
    %85 = vmatpush.msra.mxu0 %v53
    %86 = vmatmul.f32.gmra.mxu0 %v65
    %v87 = vpop.f32.mrf.mxu0
    %v88 = vadd.f32 %v62, %v87
    %89 = vmatmul.f32.gmra.mxu0 %v68
    %v90 = vpop.f32.mrf.mxu0
    %v91 = vadd.f32 %v62, %v90
    %92 = vdwg.mxu0
    %v93 = vmax.f32 %v88, 0.0
    %v94 = vmax.f32 %v91, 0.0
    %v95 = vld [vmem:[%s1 + $0x48] sm:$0xff]
    %v96 = vld [vmem:[%s1 + $0x50] sm:$0xff]
    %v97 = vld [vmem:[%s1 + $0x58] sm:$0xff]
    %v98 = vld [vmem:[%s1 + $0x60] sm:$0xff]
    %v99 = vld [vmem:[%s1 + $0x68] sm:$0xff]
    %v100 = vld [vmem:[%s1 + $0x70] sm:$0xff]
    %v101 = vld [vmem:[%s1 + $0x78] sm:$0xff]
    %v102 = vld [vmem:[%s1 + $0x80] sm:$0xff]
    %v103 = vld [vmem:[%s2 + $0x2] sm:$0x1]
    %v104 = vperm.slane %v103, 0
    %v106 = vsel %vm63, %v93, 0
    %v109 = vsel %vm63, %v94, 0
    %111 = vmatpush.msra.mxu0 0.0
    %112 = vmatpush.msra.mxu0 0.0
    %113 = vmatpush.msra.mxu0 0.0
    %114 = vmatpush.msra.mxu0 0.0
    %115 = vmatpush.msra.mxu0 0.0
    %116 = vmatpush.msra.mxu0 0.0
    %117 = vmatpush.msra.mxu0 0.0
    %118 = vmatpush.msra.mxu0 0.0
    %119 = vmatpush.msra.mxu0 %v102
    %120 = vmatpush.msra.mxu0 %v101
    %121 = vmatpush.msra.mxu0 %v100
    %122 = vmatpush.msra.mxu0 %v99
    %123 = vmatpush.msra.mxu0 %v98
    %124 = vmatpush.msra.mxu0 %v97
    %125 = vmatpush.msra.mxu0 %v96
    %126 = vmatpush.msra.mxu0 %v95
    %127 = vmatmul.f32.gmra.mxu0 %v106
    %v128 = vpop.f32.mrf.mxu0
    %v129 = vadd.f32 %v104, %v128
    %130 = vmatmul.f32.gmra.mxu0 %v109
    %v131 = vpop.f32.mrf.mxu0
    %v132 = vadd.f32 %v104, %v131
    %133 = vdwg.mxu0
    %v134 = vmax.f32 %v129, 0.0
    %v135 = vmax.f32 %v132, 0.0
    %v136 = vld [vmem:[%s2 + $0x3] sm:$0x1]
    %v137 = vld [vmem:[%s2 + $0x4] sm:$0x1]
    %vm138 = vcmask 261120
    %v139 = vsel %vm138, %v134, 0.0
    %v140 = vsel %vm138, %v135, 0.0
    %v141 = vadd.f32 %v139, %v140
    %v142 = vrot.slane %v141, 4
    %v143 = vadd.f32 %v141, %v142
    %v144 = vrot.slane %v143, 2
    %v145 = vadd.f32 %v143, %v144
    %v146 = vrot.slane %v145, 1
    %v147 = vadd.f32 %v145, %v146
    %v148 = vrcp.pop 16.0
    %v149 = vmul.f32 16.0, %v148
    %v150 = vsub.f32 1.0, %v149
    %v151 = vmul.f32 %v148, %v150
    %v152 = vadd.f32 %v148, %v151
    %vm153 = vweird.f32 %v148
    %v154 = vsel %vm153, %v148, %v152
    %v155 = vmul.f32 %v147, %v154
    %v156 = vsub.f32 %v134, %v155
    %v157 = vsub.f32 %v135, %v155
    %v158 = vmul.f32 %v156, %v156
    %v159 = vmul.f32 %v157, %v157
    %v160 = vsel %vm138, %v158, 0.0
    %v161 = vsel %vm138, %v159, 0.0
    %v162 = vadd.f32 %v160, %v161
    %v163 = vrot.slane %v162, 4
    %v164 = vadd.f32 %v162, %v163
    %v165 = vrot.slane %v164, 2
    %v166 = vadd.f32 %v164, %v165
    %v167 = vrot.slane %v166, 1
    %v168 = vadd.f32 %v166, %v167
    %v169 = vmul.f32 %v168, %v154
    %v170 = vadd.f32 %v169, 1e-05
    %v171 = vrsqrt.pop %v170
    %v172 = vmul.f32 %v171, %v170
    %v173 = vmul.f32 %v172, %v171
    %v174 = vmul.f32 0.5, %v173
    %v175 = vsub.f32 1.5, %v174
    %v176 = vmul.f32 %v171, %v175
    %vm177 = vweird.f32 %v170
    %vm178 = vweird.f32 %v171
    %vm179 = vmor %vm177, %vm178
    %v180 = vsel %vm179, %v171, %v176
    %v181 = vmul.f32 %v156, %v180
    %v182 = vmul.f32 %v157, %v180
    %v183 = vperm.slane %v136, 0
    %v184 = vmul.f32 %v181, %v183
    %v185 = vmul.f32 %v182, %v183
    %v186 = vperm.slane %v137, 0
    %v187 = vadd.f32 %v184, %v186
    %v188 = vadd.f32 %v185, %v186
    %v189 = vld [vmem:[%s2 + $0x5] sm:$0x1]
    %v190 = vmax.f32 %v189, -0.7
    %v191 = vmin.f32 %v190, 0.7
    %v192 = vld [vmem:[%s1 + $0x88] sm:$0xf]
    %193 = vrot.lane.b32.xlu0 %v15, 116
    %v194 = vpop.permute.xlu0 %193
    %195 = vrot.lane.b32.xlu0 %v17, 116
    %v196 = vpop.permute.xlu0 %195
    %vm197 = vcmask 31744
    %v198 = vsel %vm197, %v194, 0
    %v200 = vsel %vm197, %v196, 0
    %vm202 = vcmask 1043456
    %v204 = vsel %vm202, %v192, 0
    %206 = vmatpush.msra.mxu0 0.0
    %207 = vmatpush.msra.mxu0 0.0
    %208 = vmatpush.msra.mxu0 0.0
    %209 = vmatpush.msra.mxu0 0.0
    %210 = vmatpush.msra.mxu0 0.0
    %211 = vmatpush.msra.mxu0 0.0
    %212 = vmatpush.msra.mxu0 0.0
    %213 = vmatpush.msra.mxu0 0.0
    %214 = vmatpush.msra.mxu0 0.0
    %215 = vmatpush.msra.mxu0 0.0
    %216 = vmatpush.msra.mxu0 0.0
    %217 = vmatpush.msra.mxu0 0.0
    %218 = vmatpush.msra.mxu0 0.0
    %219 = vmatpush.msra.mxu0 0.0
    %220 = vmatpush.msra.mxu0 0.0
    %221 = vmatpush.msra.mxu0 %v204
    %222 = vmatmul.f32.gmra.mxu0 %v198
    %v223 = vpop.f32.mrf.mxu0
    %v224 = vadd.f32 0.0, %v223
    %225 = vmatmul.f32.gmra.mxu0 %v200
    %v226 = vpop.f32.mrf.mxu0
    %v227 = vadd.f32 0.0, %v226
    %228 = vdwg.mxu0
    %v229 = vlaneseq
    %v230 = vshrl.u32 %v229, 7
    %vm231 = vcmp.le.s32.totalorder %v230, 0
    %v232 = vsel %vm231, 1, 0
    %233 = vset.pattern.permute.xlu0 0
    %234 = vperm.xlu0 %233, %v232
    %v235 = vpop.permute.xlu0 %234
    %vm236 = vcmp.eq.s32.totalorder %v235, 1
    %v237 = vperm.slane %v191, 0
    %v238 = vsel %vm236, 0.0, %v237
    %v239 = vmul.f32 %v237, %v187
    %v240 = vmul.f32 %v237, %v188
    %v241 = vadd.f32 %v239, %v224
    %v242 = vadd.f32 %v240, %v227
    %v243 = vsel %vm236, %v241, %v224
    %v244 = vsel %vm236, %v242, %v227
    %vm245 = vcmp.ge.s32.totalorder %v230, 1
    %vm249 = vcmask 1040384
    %v250 = vrot.slane 0.0, 7
    %v251 = vrot.slane %v243, 7
    %v252 = vsel %vm249, %v250, %v251
    %v253 = vrot.slane %v244, 7
    %v254 = vsel %vm249, %v251, %v253
    %v257 = vmul.f32 %v238, %v252
    %v258 = vmul.f32 %v238, %v254
    %v259 = vadd.f32 %v257, %v243
    %v260 = vadd.f32 %v258, %v244
    %v261 = vsel %vm245, 1, 0
    %262 = vset.pattern.permute.xlu0 0
    %263 = vperm.xlu0 %262, %v261
    %v264 = vpop.permute.xlu0 %263
    %vm265 = vcmp.eq.s32.totalorder %v264, 1
    %v266 = vsel %vm265, %v259, %v243
    %v267 = vsel %vm265, %v260, %v244
    %v269 = vrot.slane %v238, 7
    %v270 = vsel %vm249, %v250, %v269
    %v271 = vsel %vm249, %v269, %v269
    %v274 = vmul.f32 %v238, %v270
    %v275 = vmul.f32 %v238, %v271
    %v276 = vsel %vm265, %v274, %v238
    %v277 = vsel %vm265, %v275, %v238
    %vm278 = vcmp.ge.s32.totalorder %v230, 2
    %vm281 = vcmask 1041408
    %v282 = vrot.slane 0.0, 6
    %v283 = vrot.slane %v266, 6
    %v284 = vsel %vm281, %v282, %v283
    %v285 = vrot.slane %v267, 6
    %v286 = vsel %vm281, %v283, %v285
    %v289 = vmul.f32 %v276, %v284
    %v290 = vmul.f32 %v277, %v286
    %v291 = vadd.f32 %v289, %v266
    %v292 = vadd.f32 %v290, %v267
    %v293 = vsel %vm278, 1, 0
    %294 = vset.pattern.permute.xlu0 0
    %295 = vperm.xlu0 %294, %v293
    %v296 = vpop.permute.xlu0 %295
    %vm297 = vcmp.eq.s32.totalorder %v296, 1
    %v298 = vsel %vm297, %v291, %v266
    %v299 = vsel %vm297, %v292, %v267
    %v302 = vrot.slane %v276, 6
    %v303 = vsel %vm281, %v282, %v302
    %v304 = vrot.slane %v277, 6
    %v305 = vsel %vm281, %v302, %v304
    %v308 = vmul.f32 %v276, %v303
    %v309 = vmul.f32 %v277, %v305
    %v310 = vsel %vm297, %v308, %v276
    %v311 = vsel %vm297, %v309, %v277
    %vm312 = vcmp.ge.s32.totalorder %v230, 4
    %v315 = vrot.slane 0.0, 4
    %v316 = vrot.slane %v298, 4
    %v317 = vsel %vm202, %v315, %v316
    %v318 = vrot.slane %v299, 4
    %v319 = vsel %vm202, %v316, %v318
    %v322 = vmul.f32 %v310, %v317
    %v323 = vmul.f32 %v311, %v319
    %v324 = vadd.f32 %v322, %v298
    %v325 = vadd.f32 %v323, %v299
    %v326 = vsel %vm312, 1, 0
    %327 = vset.pattern.permute.xlu0 0
    %328 = vperm.xlu0 %327, %v326
    %v329 = vpop.permute.xlu0 %328
    %vm330 = vcmp.eq.s32.totalorder %v329, 1
    %v331 = vsel %vm330, %v324, %v298
    %v332 = vsel %vm330, %v325, %v299
    %v333 = vld [vmem:[%s1 + $0x90] sm:$0xff]
    %v334 = vld [vmem:[%s1 + $0x98] sm:$0xff]
    %v335 = vld [vmem:[%s1 + $0xa0] sm:$0xff]
    %v336 = vld [vmem:[%s1 + $0xa8] sm:$0xff]
    %v337 = vld [vmem:[%s2 + $0x6] sm:$0x1]
    %v338 = vperm.slane %v337, 0
    %v340 = vsel %vm138, %v331, 0
    %v343 = vsel %vm138, %v332, 0
    %345 = vmatpush.msra.mxu0 0.0
    %346 = vmatpush.msra.mxu0 0.0
    %347 = vmatpush.msra.mxu0 0.0
    %348 = vmatpush.msra.mxu0 0.0
    %349 = vmatpush.msra.mxu0 0.0
    %350 = vmatpush.msra.mxu0 0.0
    %351 = vmatpush.msra.mxu0 0.0
    %352 = vmatpush.msra.mxu0 0.0
    %353 = vmatpush.msra.mxu0 0.0
    %354 = vmatpush.msra.mxu0 0.0
    %355 = vmatpush.msra.mxu0 0.0
    %356 = vmatpush.msra.mxu0 0.0
    %357 = vmatpush.msra.mxu0 %v336
    %358 = vmatpush.msra.mxu0 %v335
    %359 = vmatpush.msra.mxu0 %v334
    %360 = vmatpush.msra.mxu0 %v333
    %361 = vmatmul.f32.gmra.mxu0 %v340
    %v362 = vpop.f32.mrf.mxu0
    %v363 = vadd.f32 %v338, %v362
    %364 = vmatmul.f32.gmra.mxu0 %v343
    %v365 = vpop.f32.mrf.mxu0
    %v366 = vadd.f32 %v338, %v365
    %367 = vdwg.mxu0
    %v368 = vmax.f32 %v363, 0.0
    %v369 = vmax.f32 %v366, 0.0
    %v370 = vld [vmem:[%s1 + $0xb0] sm:$0xff]
    %v371 = vld [vmem:[%s1 + $0xb8] sm:$0xff]
    %v372 = vld [vmem:[%s1 + $0xc0] sm:$0xff]
    %v373 = vld [vmem:[%s1 + $0xc8] sm:$0xff]
    %v374 = vld [vmem:[%s1 + $0xd0] sm:$0xff]
    %v375 = vld [vmem:[%s1 + $0xd8] sm:$0xff]
    %v376 = vld [vmem:[%s1 + $0xe0] sm:$0xff]
    %v377 = vld [vmem:[%s1 + $0xe8] sm:$0xff]
    %v378 = vld [vmem:[%s2 + $0x7] sm:$0x1]
    %v379 = vperm.slane %v378, 0
    %v381 = vsel %vm63, %v368, 0
    %v384 = vsel %vm63, %v369, 0
    %386 = vmatpush.msra.mxu0 0.0
    %387 = vmatpush.msra.mxu0 0.0
    %388 = vmatpush.msra.mxu0 0.0
    %389 = vmatpush.msra.mxu0 0.0
    %390 = vmatpush.msra.mxu0 0.0
    %391 = vmatpush.msra.mxu0 0.0
    %392 = vmatpush.msra.mxu0 0.0
    %393 = vmatpush.msra.mxu0 0.0
    %394 = vmatpush.msra.mxu0 %v377
    %395 = vmatpush.msra.mxu0 %v376
    %396 = vmatpush.msra.mxu0 %v375
    %397 = vmatpush.msra.mxu0 %v374
    %398 = vmatpush.msra.mxu0 %v373
    %399 = vmatpush.msra.mxu0 %v372
    %400 = vmatpush.msra.mxu0 %v371
    %401 = vmatpush.msra.mxu0 %v370
    %402 = vmatmul.f32.gmra.mxu0 %v381
    %v403 = vpop.f32.mrf.mxu0
    %v404 = vadd.f32 %v379, %v403
    %405 = vmatmul.f32.gmra.mxu0 %v384
    %v406 = vpop.f32.mrf.mxu0
    %v407 = vadd.f32 %v379, %v406
    %408 = vdwg.mxu0
    %v409 = vmax.f32 %v404, 0.0
    %v410 = vmax.f32 %v407, 0.0
    %v411 = vld [vmem:[%s1 + $0xf0] sm:$0xff]
    %v412 = vld [vmem:[%s1 + $0xf8] sm:$0xff]
    %v413 = vld [vmem:[%s1 + $0x100] sm:$0xff]
    %v414 = vld [vmem:[%s1 + $0x108] sm:$0xff]
    %v415 = vld [vmem:[%s1 + $0x110] sm:$0xff]
    %v416 = vld [vmem:[%s1 + $0x118] sm:$0xff]
    %v417 = vld [vmem:[%s1 + $0x120] sm:$0xff]
    %v418 = vld [vmem:[%s1 + $0x128] sm:$0xff]
    %v419 = vld [vmem:[%s2 + $0x8] sm:$0x1]
    %v420 = vperm.slane %v419, 0
    %v422 = vsel %vm63, %v409, 0
    %v425 = vsel %vm63, %v410, 0
    %427 = vmatpush.msra.mxu0 0.0
    %428 = vmatpush.msra.mxu0 0.0
    %429 = vmatpush.msra.mxu0 0.0
    %430 = vmatpush.msra.mxu0 0.0
    %431 = vmatpush.msra.mxu0 0.0
    %432 = vmatpush.msra.mxu0 0.0
    %433 = vmatpush.msra.mxu0 0.0
    %434 = vmatpush.msra.mxu0 0.0
    %435 = vmatpush.msra.mxu0 %v418
    %436 = vmatpush.msra.mxu0 %v417
    %437 = vmatpush.msra.mxu0 %v416
    %438 = vmatpush.msra.mxu0 %v415
    %439 = vmatpush.msra.mxu0 %v414
    %440 = vmatpush.msra.mxu0 %v413
    %441 = vmatpush.msra.mxu0 %v412
    %442 = vmatpush.msra.mxu0 %v411
    %443 = vmatmul.f32.gmra.mxu0 %v422
    %v444 = vpop.f32.mrf.mxu0
    %v445 = vadd.f32 %v420, %v444
    %446 = vmatmul.f32.gmra.mxu0 %v425
    %v447 = vpop.f32.mrf.mxu0
    %v448 = vadd.f32 %v420, %v447
    %449 = vdwg.mxu0
    %450 = vst.msk [vmem:[#allocation2] sm:$0xff] %vm21, %v445
    %s451 = scalar_lea.vmem [#allocation2], 8
    %452 = vst.msk [vmem:[%s451] sm:$0xff] %vm21, %v448
    // Predicated region
    $region14: #{_lambda_.1} parent=1 // pred_check
      _
    $region15: #{_lambda_.1} parent=1 // pred_check_branch
      %454 = sbr.rel (0) target = $region17
    $region16: #{_lambda_.1} parent=1 // pred_region
      %456 = vsyncadd [#allocation3], 0
      %s457 = sshll.u32 [#allocation2], 4
      %s458 = int_to_ptr.vmem [resolvable:$true] %s457
      %s459 = sshll.u32 %s3, 4
      %s460 = int_to_ptr.hbm [resolvable:$true] %s459
      %465 = dma.vmem_to_hbm [thread:$0]  %s458, 256, %s460, [#allocation3], 128, 128, 8
    $region17: #{_lambda_.1} parent=1 // pred_fallthru
      _
    // Predicated region
    $region18: #{_lambda_.1} parent=1 // pred_check
      _
    $region19: #{_lambda_.1} parent=1 // pred_check_branch
      %467 = sbr.rel (0) target = $region21
    $region20: #{_lambda_.1} parent=1 // pred_region
      %469 = dma.done [#allocation3], 256
    $region21: #{_lambda_.1} parent=1 // pred_fallthru
      _
    %470 = vsyncpa [#allocation3], 1

</llo_original>
